<compile_context>
chip_gen: v7x
topology: tpu7x:2x2x1
jax: 0.10.0
libtpu: 0.0.40
codegen_flags: <defaults>
</compile_context>

<pallas_src>
import functools

import jax
import jax.numpy as jnp
from jax.experimental import pallas as pl
from jax.experimental.pallas import tpu as pltpu


def _distill_kl_kernel(ys_ref, yt_ref, o_ref, acc_ref, *,
                       inv_t, scale, tile_b, nb, nb_per_p, batch):
    p = pl.program_id(0)   # partial-sum index (parallel)
    i = pl.program_id(1)   # batch-tile index within this partial (arbitrary)

    # Zero the running accumulator at the start of each partial's reduction.
    @pl.when(i == 0)
    def _():
        acc_ref[...] = jnp.zeros_like(acc_ref)

    # Upcast + temperature scale (multiply by baked-in 1/T, no full-tile divide).
    ys = ys_ref[...].astype(jnp.float32) * inv_t
    yt = yt_ref[...].astype(jnp.float32) * inv_t

    # Student: only the log-partition (log_softmax denominator) is needed.
    ys_max = jnp.max(ys, axis=-1, keepdims=True)
    ys_shift = ys - ys_max
    z_s = jnp.sum(jnp.exp(ys_shift), axis=-1, keepdims=True)
    log_z_s = jnp.log(z_s)

    # Teacher: shifted logits, exp, partition.
    yt_max = jnp.max(yt, axis=-1, keepdims=True)
    yt_shift = yt - yt_max
    exp_t = jnp.exp(yt_shift)
    z_t = jnp.sum(exp_t, axis=-1, keepdims=True)
    log_z_t = jnp.log(z_t)

    # Per-row KL, algebraically simplified:
    #   sum_j p_t_j (log p_t_j - log p_s_j)
    #     = (1/z_t) * sum_j exp_t_j * (yt_shift_j - ys_shift_j)
    #       + (log_z_s - log_z_t)
    # -> removes the per-element divide and the explicit p_t / log_p_t tensors.
    inner = jnp.sum(exp_t * (yt_shift - ys_shift), axis=-1, keepdims=True)
    kl_row = inner * pl.reciprocal(z_t, approx=False) + (log_z_s - log_z_t)

    # Mask rows outside the real batch (ragged last tile and the clamped
    # duplicate tail block when nb is not divisible by the partial count).
    blk = p * nb_per_p + i                      # un-clamped global block index
    row0 = blk * tile_b
    row_ids = row0 + jax.lax.broadcasted_iota(jnp.int32, kl_row.shape, 0)
    kl_row = jnp.where(row_ids < batch, kl_row, 0.0)

    # Two-stage reduction: per-row sums above, scalar accumulate across tiles.
    acc_ref[...] += jnp.sum(kl_row, keepdims=True)

    # Last step of this partial: apply T^2/B and emit a lane-dense (8,128)
    # block whose [0,0] holds the scaled partial sum, rest exact zeros.
    @pl.when(i == nb_per_p - 1)
    def _():
        r = jax.lax.broadcasted_iota(jnp.int32, (8, 128), 0)
        l = jax.lax.broadcasted_iota(jnp.int32, (8, 128), 1)
        o_ref[...] = jnp.where((r == 0) & (l == 0), acc_ref[...] * scale, 0.0)


def _choose_tile_b(B, C, itemsize):
    """Largest batch tile (multiple of 8) that keeps the pipeline in VMEM."""
    io_budget = 6 * 1024 * 1024    # 2 inputs x 2 pipeline buffers of tile_b*C
    tmp_budget = 2 * 1024 * 1024   # per f32 compute temporary of tile_b*C
    rows = min(io_budget // max(1, 4 * C * itemsize),
               tmp_budget // max(1, 4 * C))
    rows = max(8, (rows // 8) * 8)
    rows = min(rows, 1024)
    if B <= rows:
        return B                   # single block equals full batch dim (OK)
    return rows


def distill_kl(y_s, y_t, T, *, tile_b=None, num_partials=2):
    """Pallas implementation of DistillKL(T)(y_s, y_t). Returns a scalar."""
    assert y_s.shape == y_t.shape and y_s.ndim == 2
    B, C = y_s.shape

    if tile_b is None:
        tile_b = _choose_tile_b(B, C, jnp.dtype(y_s.dtype).itemsize)
    tile_b = min(int(tile_b), B)
    if tile_b < B:
        tile_b = max(8, (tile_b // 8) * 8)   # (8,128) sublane constraint
        if tile_b >= B:
            tile_b = B

    nb = pl.cdiv(B, tile_b)                  # number of batch tiles
    P = num_partials if nb >= num_partials else 1
    nb_per_p = pl.cdiv(nb, P)

    kernel = functools.partial(
        _distill_kl_kernel,
        inv_t=1.0 / float(T),
        scale=float(T) * float(T) / float(B),
        tile_b=tile_b, nb=nb, nb_per_p=nb_per_p, batch=B)

    def in_map(p, i):
        blk = p * nb_per_p + i
        blk = jnp.minimum(blk, nb - 1)       # keep redundant tail blocks in-bounds
        return (blk, 0)

    out = pl.pallas_call(
        kernel,
        out_shape=jax.ShapeDtypeStruct((P * 8, 128), jnp.float32),
        grid_spec=pltpu.PrefetchScalarGridSpec(
            num_scalar_prefetch=0,
            grid=(P, nb_per_p),
            in_specs=[pl.BlockSpec((tile_b, C), in_map),
                      pl.BlockSpec((tile_b, C), in_map)],
            out_specs=pl.BlockSpec((8, 128), lambda p, i: (p, 0)),
            scratch_shapes=[pltpu.VMEM((1, 1), jnp.float32)]),
        compiler_params=pltpu.CompilerParams(
            dimension_semantics=("parallel", "arbitrary"),
            vmem_limit_bytes=32 * 1024 * 1024),
    )(y_s, y_t)

    # Each partial's scaled sum sits at out[8*p, 0]; everything else is 0.
    return jnp.sum(out)


def _distill_kl_ref(y_s, y_t, T):
    """Pure-JAX reference (mirrors the PyTorch forward)."""
    log_p_s = jax.nn.log_softmax(y_s / T, axis=1)
    p_t = jax.nn.softmax(y_t / T, axis=1)
    log_p_t = jax.nn.log_softmax(y_t / T, axis=1)
    return jnp.sum(p_t * (log_p_t - log_p_s)) * (T ** 2) / y_s.shape[0]


if __name__ == "__main__":
    T = 4.0
    key = jax.random.PRNGKey(0)
    k1, k2, k3, k4 = jax.random.split(key, 4)

    # Case 1: small spec-like shape (single tile, single partial).
    y_s = jax.random.normal(k1, (8, 32), dtype=jnp.float32)
    y_t = jax.random.normal(k2, (8, 32), dtype=jnp.float32)
    loss = jax.block_until_ready(distill_kl(y_s, y_t, T))
    ref = jax.block_until_ready(_distill_kl_ref(y_s, y_t, T))
    assert jnp.allclose(loss, ref, rtol=1e-3, atol=1e-5), (loss, ref)

    # Case 2: force the tiled path (ragged batch, 2 partial sums, clamped
    # duplicate tail block) on a still-small problem.
    y_s2 = jax.random.normal(k3, (40, 160), dtype=jnp.float32)
    y_t2 = jax.random.normal(k4, (40, 160), dtype=jnp.float32)
    loss2 = jax.block_until_ready(distill_kl(y_s2, y_t2, T, tile_b=16))
    ref2 = jax.block_until_ready(_distill_kl_ref(y_s2, y_t2, T))
    assert jnp.allclose(loss2, ref2, rtol=1e-3, atol=1e-5), (loss2, ref2)

    print("KERNEL_OK")
</pallas_src>

<mosaic_0001>
module attributes {stable_mosaic.version = 11 : i64} {
  func.func @_distill_kl_kernel(%arg0: i32, %arg1: i32, %arg2: memref<8x32xf32, #tpu.memory_space<vmem>>, %arg3: memref<8x32xf32, #tpu.memory_space<vmem>>, %arg4: memref<8x128xf32, #tpu.memory_space<vmem>>, %arg5: memref<1x1xf32, #tpu.memory_space<vmem>>) attributes {dimension_semantics = [#tpu.dimension_semantics<parallel>, #tpu.dimension_semantics<arbitrary>], iteration_bounds = array<i64: 1, 1>, scalar_prefetch = 0 : i64, scratch_operands = 1 : i64, tpu.core_type = #tpu.core_type<tc>, window_params = [{transform_indices = @transform_0, window_bounds = array<i64: 8, 32>}, {transform_indices = @transform_1, window_bounds = array<i64: 8, 32>}, {transform_indices = @transform_2, window_bounds = array<i64: 8, 128>}]} {
    %c0_i32 = arith.constant 0 : i32
    %0 = arith.cmpi eq, %arg1, %c0_i32 : i32
    %1 = arith.extui %0 : i1 to i32
    %c0_i32_0 = arith.constant 0 : i32
    %2 = arith.cmpi ne, %1, %c0_i32_0 : i32
    scf.if %2 {
      %cst_19 = arith.constant 0.000000e+00 : f32
      %54 = vector.broadcast %cst_19 : f32 to vector<1x1xf32>
      %c0_20 = arith.constant 0 : index
      %c0_21 = arith.constant 0 : index
      %55 = vector.load %arg5[%c0_20, %c0_21] : memref<1x1xf32, #tpu.memory_space<vmem>>, vector<1x1xf32>
      tpu.vector_store %arg5[%c0_20, %c0_21], %54 {strides = array<i32>} : memref<1x1xf32, #tpu.memory_space<vmem>>, vector<1x1xf32>,
    } else {
    }
    %c0 = arith.constant 0 : index
    %c0_1 = arith.constant 0 : index
    %3 = vector.load %arg2[%c0, %c0_1] : memref<8x32xf32, #tpu.memory_space<vmem>>, vector<8x32xf32>
    %cst = arith.constant 2.500000e-01 : f32
    %4 = vector.broadcast %cst : f32 to vector<8x32xf32>
    %5 = arith.mulf %3, %4 : vector<8x32xf32>
    %c0_2 = arith.constant 0 : index
    %c0_3 = arith.constant 0 : index
    %6 = vector.load %arg3[%c0_2, %c0_3] : memref<8x32xf32, #tpu.memory_space<vmem>>, vector<8x32xf32>
    %cst_4 = arith.constant 2.500000e-01 : f32
    %7 = vector.broadcast %cst_4 : f32 to vector<8x32xf32>
    %8 = arith.mulf %6, %7 : vector<8x32xf32>
    %cst_5 = arith.constant dense<0xFF800000> : vector<8xf32>
    %9 = vector.multi_reduction <maximumf>, %5, %cst_5 [1] : vector<8x32xf32> to vector<8xf32>
    %10 = vector.shape_cast %9 : vector<8xf32> to vector<8x1xf32>
    %11 = vector.broadcast %10 : vector<8x1xf32> to vector<8x32xf32>
    %12 = arith.subf %5, %11 : vector<8x32xf32>
    %13 = math.exp %12 : vector<8x32xf32>
    %cst_6 = arith.constant dense<0.000000e+00> : vector<8xf32>
    %14 = vector.multi_reduction <add>, %13, %cst_6 [1] : vector<8x32xf32> to vector<8xf32>
    %15 = vector.shape_cast %14 : vector<8xf32> to vector<8x1xf32>
    %16 = math.log %15 : vector<8x1xf32>
    %cst_7 = arith.constant dense<0xFF800000> : vector<8xf32>
    %17 = vector.multi_reduction <maximumf>, %8, %cst_7 [1] : vector<8x32xf32> to vector<8xf32>
    %18 = vector.shape_cast %17 : vector<8xf32> to vector<8x1xf32>
    %19 = vector.broadcast %18 : vector<8x1xf32> to vector<8x32xf32>
    %20 = arith.subf %8, %19 : vector<8x32xf32>
    %21 = math.exp %20 : vector<8x32xf32>
    %cst_8 = arith.constant dense<0.000000e+00> : vector<8xf32>
    %22 = vector.multi_reduction <add>, %21, %cst_8 [1] : vector<8x32xf32> to vector<8xf32>
    %23 = vector.shape_cast %22 : vector<8xf32> to vector<8x1xf32>
    %24 = math.log %23 : vector<8x1xf32>
    %25 = arith.subf %20, %12 : vector<8x32xf32>
    %26 = arith.mulf %21, %25 : vector<8x32xf32>
    %cst_9 = arith.constant dense<0.000000e+00> : vector<8xf32>
    %27 = vector.multi_reduction <add>, %26, %cst_9 [1] : vector<8x32xf32> to vector<8xf32>
    %28 = vector.shape_cast %27 : vector<8xf32> to vector<8x1xf32>
    %29 = tpu.reciprocal %23 : vector<8x1xf32> -> vector<8x1xf32>
    %30 = arith.mulf %28, %29 : vector<8x1xf32>
    %31 = arith.subf %16, %24 : vector<8x1xf32>
    %32 = arith.addf %30, %31 : vector<8x1xf32>
    %c1_i32 = arith.constant 1 : i32
    %33 = arith.muli %arg0, %c1_i32 : i32
    %34 = arith.addi %33, %arg1 : i32
    %c8_i32 = arith.constant 8 : i32
    %35 = arith.muli %34, %c8_i32 : i32
    %36 = tpu.iota {dimensions = array<i32: 0>} : vector<8x1xi32>
    %37 = vector.broadcast %35 : i32 to vector<8x1xi32>
    %38 = arith.addi %37, %36 : vector<8x1xi32>
    %c8_i32_10 = arith.constant 8 : i32
    %39 = vector.broadcast %c8_i32_10 : i32 to vector<8x1xi32>
    %40 = arith.cmpi slt, %38, %39 : vector<8x1xi32>
    %cst_11 = arith.constant 0.000000e+00 : f32
    %41 = vector.broadcast %cst_11 : f32 to vector<8x1xf32>
    %42 = arith.select %40, %32, %41 : vector<8x1xi1>, vector<8x1xf32>
    %c0_12 = arith.constant 0 : index
    %c0_13 = arith.constant 0 : index
    %43 = vector.load %arg5[%c0_12, %c0_13] : memref<1x1xf32, #tpu.memory_space<vmem>>, vector<1x1xf32>
    %44 = vector.shape_cast %42 : vector<8x1xf32> to vector<1x8x1xf32>
    %cst_14 = arith.constant dense<0.000000e+00> : vector<1xf32>
    %45 = vector.multi_reduction <add>, %44, %cst_14 [1, 2] : vector<1x8x1xf32> to vector<1xf32>
    %46 = vector.shape_cast %45 : vector<1xf32> to vector<1x1x1xf32>
    %47 = vector.extract %46[0, 0, 0] : f32 from vector<1x1x1xf32>
    %48 = vector.broadcast %47 : f32 to vector<1x1xf32>
    %49 = arith.addf %43, %48 : vector<1x1xf32>
    %c0_15 = arith.constant 0 : index
    %c0_16 = arith.constant 0 : index
    %50 = vector.load %arg5[%c0_15, %c0_16] : memref<1x1xf32, #tpu.memory_space<vmem>>, vector<1x1xf32>
    tpu.vector_store %arg5[%c0_15, %c0_16], %49 {strides = array<i32>} : memref<1x1xf32, #tpu.memory_space<vmem>>, vector<1x1xf32>,
    %c0_i32_17 = arith.constant 0 : i32
    %51 = arith.cmpi eq, %arg1, %c0_i32_17 : i32
    %52 = arith.extui %51 : i1 to i32
    %c0_i32_18 = arith.constant 0 : i32
    %53 = arith.cmpi ne, %52, %c0_i32_18 : i32
    scf.if %53 {
      %54 = tpu.iota {dimensions = array<i32: 0>} : vector<8x128xi32>
      %55 = tpu.iota {dimensions = array<i32: 1>} : vector<8x128xi32>
      %c0_i32_19 = arith.constant 0 : i32
      %56 = vector.broadcast %c0_i32_19 : i32 to vector<8x128xi32>
      %57 = arith.cmpi eq, %54, %56 : vector<8x128xi32>
      %c0_i32_20 = arith.constant 0 : i32
      %58 = vector.broadcast %c0_i32_20 : i32 to vector<8x128xi32>
      %59 = arith.cmpi eq, %55, %58 : vector<8x128xi32>
      %60 = arith.andi %57, %59 : vector<8x128xi1>
      %c0_21 = arith.constant 0 : index
      %c0_22 = arith.constant 0 : index
      %61 = vector.load %arg5[%c0_21, %c0_22] : memref<1x1xf32, #tpu.memory_space<vmem>>, vector<1x1xf32>
      %cst_23 = arith.constant 2.000000e+00 : f32
      %62 = vector.broadcast %cst_23 : f32 to vector<1x1xf32>
      %63 = arith.mulf %61, %62 : vector<1x1xf32>
      %cst_24 = arith.constant 0.000000e+00 : f32
      %64 = vector.shape_cast %63 : vector<1x1xf32> to vector<1x1xf32>
      %65 = vector.broadcast %64 : vector<1x1xf32> to vector<8x128xf32>
      %66 = vector.broadcast %cst_24 : f32 to vector<8x128xf32>
      %67 = arith.select %60, %65, %66 : vector<8x128xi1>, vector<8x128xf32>
      %c0_25 = arith.constant 0 : index
      %c0_26 = arith.constant 0 : index
      %68 = vector.load %arg4[%c0_25, %c0_26] : memref<8x128xf32, #tpu.memory_space<vmem>>, vector<8x128xf32>
      tpu.vector_store %arg4[%c0_25, %c0_26], %67 {strides = array<i32>} : memref<8x128xf32, #tpu.memory_space<vmem>>, vector<8x128xf32>,
    } else {
    }
    return
  }
  func.func @transform_0(%arg0: i32, %arg1: i32) -> (i32, i32) {
    %c1_i32 = arith.constant 1 : i32
    %0 = arith.muli %arg0, %c1_i32 : i32
    %1 = arith.addi %0, %arg1 : i32
    %c0_i32 = arith.constant 0 : i32
    %2 = arith.minsi %1, %c0_i32 : i32
    %c0_i32_0 = arith.constant 0 : i32
    %c0_i32_1 = arith.constant 0 : i32
    return %2, %c0_i32_0 : i32, i32
  }
  func.func @transform_1(%arg0: i32, %arg1: i32) -> (i32, i32) {
    %c1_i32 = arith.constant 1 : i32
    %0 = arith.muli %arg0, %c1_i32 : i32
    %1 = arith.addi %0, %arg1 : i32
    %c0_i32 = arith.constant 0 : i32
    %2 = arith.minsi %1, %c0_i32 : i32
    %c0_i32_0 = arith.constant 0 : i32
    %c0_i32_1 = arith.constant 0 : i32
    return %2, %c0_i32_0 : i32, i32
  }
  func.func @transform_2(%arg0: i32, %arg1: i32) -> (i32, i32) {
    %c0_i32 = arith.constant 0 : i32
    %c0_i32_0 = arith.constant 0 : i32
    return %arg0, %c0_i32 : i32, i32
  }
}

</mosaic_0001>

<llo_original>
// kernel: tpu_custom_call.1
$region0: #{tpu_custom_call.1}
  #allocation0 [shape = 'u32[]', space=smem, size = 0x4, offset = 0x4, fixed_abs, tag = 'smem constant byte address 0x4 - core index']
  #allocation1 [shape = 'u32[144,128]{1,0:T(1,128)}', space=vmem, size = 0x12000, scoped, tag = 'internal scratch']
  #allocation2 [shape = 'f32[1,1]{1,0:T(1,128)}', space=vmem, size = 0x200, scoped, tag = 'scratch operand']
  %s0 = inlined_call_operand.hbm [shape: f32[8,32], index: 0, kind: input, shape index: {}]
  %s1 = inlined_call_operand.hbm [shape: f32[8,32], index: 1, kind: input, shape index: {}]
  %s2 = inlined_call_operand.hbm [shape: f32[8,128], index: 2, kind: output, shape index: {}]
  %s3 = sld [smem:[#allocation0]]
  $region34: #{tpu_custom_call.1} parent=0
    _
  %s5 = ssub.s32 1, %s3
  %s6 = scalar_select 0, %s5, %s3
  $region1: #{tpu_custom_call.1} parent=0
    #allocation3 [shape = 'u8[4096]{0}', space=vmem, size = 0x1000, scoped, tag = 'input window, operand 0, single buffered']
    #allocation4 [shape = 's32[1]{0}', space=sflag, size = 0x4, scoped, tag = 'scoped memory for tpu_custom_call.1']
    #allocation5 [shape = 's32[1]{0}', space=sflag, size = 0x4, scoped, tag = 'scoped memory for tpu_custom_call.1']
    #allocation6 [shape = 'u8[4096]{0}', space=vmem, size = 0x1000, scoped, tag = 'input window, operand 1, single buffered']
    #allocation7 [shape = 's32[1]{0}', space=sflag, size = 0x4, scoped, tag = 'scoped memory for tpu_custom_call.1']
    #allocation8 [shape = 'u8[4096]{0}', space=vmem, size = 0x1000, scoped, tag = 'output window, operand 0, single buffered']
    %7 = vsyncpa [#allocation4], 0
    %8 = vsyncpa [#allocation7], 0
    %9 = vsyncpa [#allocation5], 0
    // Predicated region
    $region2: #{tpu_custom_call.1} parent=1 // pred_check
      _
    $region3: #{tpu_custom_call.1} parent=1 // pred_check_branch
      %11 = sbr.rel (0) target = $region5
    $region4: #{tpu_custom_call.1} parent=1 // pred_region
      %s12 = sadd.s32 0, 0
      %p13 = scmp.lt.s32.totalorder %s12, 0
      %s14 = scalar_select %p13, %s12, 0
      %s16 = ssub.s32 128, 128
      %17 = vsyncadd [#allocation4], %s16
      %s18 = smul.addr %s14, 128
      %s19 = scalar_lea.hbm %s0, %s18
      %s21 = sshll.u32 [#allocation3], 4
      %s22 = int_to_ptr.vmem [resolvable:$true] %s21
      %24 = dma.hbm_to_vmem [thread:$0]  %s19, 128, %s22, [#allocation4]
    $region5: #{tpu_custom_call.1} parent=1 // pred_fallthru
      _
    // Predicated region
    $region6: #{tpu_custom_call.1} parent=1 // pred_check
      _
    $region7: #{tpu_custom_call.1} parent=1 // pred_check_branch
      %26 = sbr.rel (0) target = $region9
    $region8: #{tpu_custom_call.1} parent=1 // pred_region
      %s27 = sadd.s32 0, 0
      %p28 = scmp.lt.s32.totalorder %s27, 0
      %s29 = scalar_select %p28, %s27, 0
      %s31 = ssub.s32 128, 128
      %32 = vsyncadd [#allocation7], %s31
      %s33 = smul.addr %s29, 128
      %s34 = scalar_lea.hbm %s1, %s33
      %s36 = sshll.u32 [#allocation6], 4
      %s37 = int_to_ptr.vmem [resolvable:$true] %s36
      %39 = dma.hbm_to_vmem [thread:$0]  %s34, 128, %s37, [#allocation7]
    $region9: #{tpu_custom_call.1} parent=1 // pred_fallthru
      _
    // Predicated region
    $region10: #{tpu_custom_call.1} parent=1 // pred_check
      _
    $region11: #{tpu_custom_call.1} parent=1 // pred_check_branch
      %41 = sbr.rel (0) target = $region13
    $region12: #{tpu_custom_call.1} parent=1 // pred_region
      %42 = dma.done [#allocation4], 128
    $region13: #{tpu_custom_call.1} parent=1 // pred_fallthru
      _
    // Predicated region
    $region14: #{tpu_custom_call.1} parent=1 // pred_check
      _
    $region15: #{tpu_custom_call.1} parent=1 // pred_check_branch
      %44 = sbr.rel (0) target = $region17
    $region16: #{tpu_custom_call.1} parent=1 // pred_region
      %45 = dma.done [#allocation7], 128
    $region17: #{tpu_custom_call.1} parent=1 // pred_fallthru
      _
    %s46 = sadd.s32 0, 0
    %p47 = scmp.lt.s32.totalorder %s46, 0
    %s48 = scalar_select %p47, %s46, 0
    %s49 = sadd.s32 0, 0
    %p50 = scmp.lt.s32.totalorder %s49, 0
    %s51 = scalar_select %p50, %s49, 0
    %p52 = scmp.eq.s32.totalorder 0, 0
    // Predicated region
    $region18: #{tpu_custom_call.1} parent=1 // pred_check
      %p53 = pneg %p52
    $region19: #{tpu_custom_call.1} parent=1 // pred_check_branch
      %55 = sbr.rel (%p53) target = $region21
    $region20: #{tpu_custom_call.1} parent=1 // pred_region
      %vm56 = vcmask 0
      %57 = vst.msk [vmem:[#allocation2] sm:$0x1] %vm56, 0.0
    $region21: #{tpu_custom_call.1} parent=1 // pred_fallthru
      _
    %v58 = vld [vmem:[#allocation3] sm:$0xff]
    %v59 = vmul.f32 %v58, 0.25
    %v60 = vld [vmem:[#allocation6] sm:$0xff]
    %v61 = vmul.f32 %v60, 0.25
    %vm62 = vcmask 261120
    %v63 = vsel %vm62, %v59, -inf
    %64 = vmax.xlane.f32.xlu0 %v63
    %v65 = vpop.xlane.xlu0 %64
    %v66 = vsub.f32 %v59, %v65
    %v67 = vmul.f32 %v66, 1.442695
    %v68 = vpow.pop %v67
    %v69 = vsel %vm62, %v68, 0.0
    %70 = vadd.xlane.f32.xlu0 %v69
    %v71 = vpop.xlane.xlu0 %70
    %v72 = vlog2.pop %v71
    %v73 = vmul.f32 %v72, 0.6931472
    %v74 = vsel %vm62, %v61, -inf
    %75 = vmax.xlane.f32.xlu0 %v74
    %v76 = vpop.xlane.xlu0 %75
    %v77 = vsub.f32 %v61, %v76
    %v78 = vmul.f32 %v77, 1.442695
    %v79 = vpow.pop %v78
    %v80 = vsel %vm62, %v79, 0.0
    %81 = vadd.xlane.f32.xlu0 %v80
    %v82 = vpop.xlane.xlu0 %81
    %v83 = vlog2.pop %v82
    %v84 = vmul.f32 %v83, 0.6931472
    %v85 = vsub.f32 %v77, %v66
    %v86 = vmul.f32 %v79, %v85
    %v87 = vsel %vm62, %v86, 0.0
    %88 = vadd.xlane.f32.xlu0 %v87
    %v89 = vpop.xlane.xlu0 %88
    %v90 = vrcp.pop %v82
    %v91 = vmul.f32 %v89, %v90
    %v92 = vsub.f32 %v73, %v84
    %v93 = vadd.f32 %v91, %v92
    %s94 = sadd.s32 0, 0
    %s95 = smul.u32 %s94, 8
    %v96 = vlaneseq
    %v97 = vshrl.u32 %v96, 7
    %v98 = vstv %s95
    %v99 = vadd.s32 %v98, %v97
    %vm100 = vcmp.lt.s32.totalorder %v99, 8
    %v101 = vsel %vm100, %v93, 0.0
    %v102 = vld [vmem:[#allocation2] sm:$0x1]
    %vm103 = vcmask 7168
    %v104 = vsel %vm103, %v101, 0.0
    %105 = vadd.xlane.f32.xlu0 %v104
    %v106 = vpop.xlane.xlu0 %105
    %v107 = vrot.slane %v106, 4
    %v108 = vadd.f32 %v106, %v107
    %v109 = vrot.slane %v108, 2
    %v110 = vadd.f32 %v108, %v109
    %v111 = vrot.slane %v110, 1
    %v112 = vadd.f32 %v110, %v111
    %s113 = vtos %v112
    %v114 = vstv %s113
    %v115 = vadd.f32 %v102, %v114
    %vm116 = vcmask 0
    %117 = vst.msk [vmem:[#allocation2] sm:$0x1] %vm116, %v115
    // Predicated region
    $region22: #{tpu_custom_call.1} parent=1 // pred_check
      %p118 = pneg %p52
    $region23: #{tpu_custom_call.1} parent=1 // pred_check_branch
      %120 = sbr.rel (%p118) target = $region25
    $region24: #{tpu_custom_call.1} parent=1 // pred_region
      %v121 = vlaneseq
      %v122 = vand.u32 %v121, 127
      %vm123 = vcmp.eq.s32.totalorder %v97, 0
      %vm124 = vcmp.eq.s32.totalorder %v122, 0
      %vm125 = vmand %vm123, %vm124
      %v126 = vld [vmem:[#allocation2] sm:$0x1]
      %v127 = vmul.f32 %v126, 2.0
      %v129 = vlaneseq
      %v130 = vshrl.u32 %v129, 7
      %v131 = vsub.s32 0, %v130
      %v132 = vrot.slane %v127, %v131
      %133 = vset.pattern.permute.xlu0 0
      %134 = vperm.xlu0 %133, %v132
      %v135 = vpop.permute.xlu0 %134
      %v137 = vsel %vm125, %v135, 0.0
      %138 = vst [vmem:[#allocation8] sm:$0xff] %v137
    $region25: #{tpu_custom_call.1} parent=1 // pred_fallthru
      _
    // Predicated region
    $region26: #{tpu_custom_call.1} parent=1 // pred_check
      _
    $region27: #{tpu_custom_call.1} parent=1 // pred_check_branch
      %140 = sbr.rel (0) target = $region29
    $region28: #{tpu_custom_call.1} parent=1 // pred_region
      %s142 = ssub.s32 128, 128
      %143 = vsyncadd [#allocation5], %s142
      %s145 = sshll.u32 [#allocation8], 4
      %s146 = int_to_ptr.vmem [resolvable:$true] %s145
      %148 = dma.vmem_to_hbm [thread:$0]  %s146, 128, %s2, [#allocation5]
    $region29: #{tpu_custom_call.1} parent=1 // pred_fallthru
      _
    // Predicated region
    $region30: #{tpu_custom_call.1} parent=1 // pred_check
      _
    $region31: #{tpu_custom_call.1} parent=1 // pred_check_branch
      %150 = sbr.rel (0) target = $region33
    $region32: #{tpu_custom_call.1} parent=1 // pred_region
      %151 = dma.done [#allocation5], 128
    $region33: #{tpu_custom_call.1} parent=1 // pred_fallthru
      _
    %152 = vsyncpa [#allocation4], 1
    %153 = vsyncpa [#allocation7], 1
    %154 = vsyncpa [#allocation5], 1

</llo_original>
